<compile_context>
chip_gen: v6e
topology: v6e:2x2x1
jax: 0.10.0
libtpu: 0.0.40
codegen_flags: <defaults>
</compile_context>

<pallas_src>
import math
import functools

import jax
import jax.numpy as jnp
from jax.experimental import pallas as pl
from jax.experimental.pallas import tpu as pltpu


# ----------------------------- config (LMConfig analogue) -------------------
class RouterConfig:
    embedding_dim = 32          # gating_dim / hidden size
    n_routed_experts = 8
    num_experts_per_tok = 2     # top_k
    scoring_func = "softmax"
    aux_loss_alpha = 0.1
    seq_aux = True
    norm_topk_prob = True


def _round_up(x: int, m: int) -> int:
    return (x + m - 1) // m * m


# ----------------------------- Pallas kernel --------------------------------
def _router_kernel(x_ref, w_ref, topk_w_ref, topk_i_ref, part_ref,
                   *, top_k: int, norm_topk_prob: bool, seq_len: int):
    # x_ref: (tm, h) tokens-tile (bf16/native dtype), w_ref: (E, h) gate weight.
    x = x_ref[...]                               # MXU takes bf16 natively
    w = w_ref[...]
    tm = x.shape[0]
    n_exp = w.shape[0]
    bsz = part_ref.shape[-1]

    # logits^T = W @ x^T  -> (E, tm): tokens on the lane axis (lane-dense).
    logits = jax.lax.dot_general(
        w, x, dimension_numbers=(((1,), (1,)), ((), ())),
        preferred_element_type=jnp.float32)                      # (E, tm) f32

    # un-normalized softmax: e = exp(logits - max); 1/sum via the EUP.
    m = jnp.max(logits, axis=0, keepdims=True)                   # (1, tm)
    e = jnp.exp(logits - m)                                      # (E, tm)
    s = jnp.sum(e, axis=0, keepdims=True)                        # (1, tm)
    inv_s = pl.reciprocal(s, approx=True)                        # (1, tm)

    # ---- iterative top-k on unnormalized e (monotonic in the softmax) ------
    e_idx = jax.lax.broadcasted_iota(
        jnp.int32, e.shape, 0).astype(jnp.float32)               # (E, tm)

    # top-1 reuses the softmax stats: max of e is exactly 1.0, argmax where
    # logits hit the row max -> no extra sublane max reduction.
    idx0 = jnp.min(jnp.where(logits == m, e_idx, float(n_exp)),
                   axis=0, keepdims=True)                        # (1, tm)
    vals = [jnp.ones((1, tm), jnp.float32)]                      # unnormalized
    idxs = [idx0]
    work = jnp.where(e_idx == idx0, -1.0, e)                     # e >= 0
    for _ in range(1, top_k):
        mx = jnp.max(work, axis=0, keepdims=True)                # (1, tm)
        idx = jnp.min(jnp.where(work == mx, e_idx, float(n_exp)),
                      axis=0, keepdims=True)
        vals.append(mx)
        idxs.append(idx)
        work = jnp.where(e_idx == idx, -1.0, work)

    if top_k > 1 and norm_topk_prob:
        # softmax denominator cancels: w_k = e_k / sum_topk(e_j)
        denom = vals[0]
        for v in vals[1:]:
            denom = denom + v
        inv = pl.reciprocal(denom + 1e-20, approx=True)
        out_vals = [v * inv for v in vals]
    else:
        # plain softmax probabilities: scale only the emitted top_k rows.
        out_vals = [v * inv_s for v in vals]

    # single lane-dense store per output (no per-row masked vst)
    topk_w_ref[...] = jnp.concatenate(out_vals, axis=0)
    topk_i_ref[...] = jnp.concatenate(idxs, axis=0).astype(jnp.int32)

    # ---- per-batch partial score sums (E, bsz) for the aux loss ------------
    # Tokens stay on the lane axis: one-hot is (bsz, tm); the per-token 1/sum
    # is folded into it so the full (E, tm) normalized scores never exist.
    t_global = (pl.program_id(0) * tm
                + jax.lax.broadcasted_iota(jnp.int32, (bsz, tm), 1))
    b_idx = jax.lax.broadcasted_iota(jnp.int32, (bsz, tm), 0)
    onehot = jnp.logical_and(t_global >= b_idx * seq_len,
                             t_global < (b_idx + 1) * seq_len
                             ).astype(jnp.float32)               # (bsz, tm)
    onehot = onehot * inv_s                                      # fold 1/sum
    part = jax.lax.dot_general(
        e, onehot, dimension_numbers=(((1,), (1,)), ((), ())),
        preferred_element_type=jnp.float32)                      # (E, bsz)
    part_ref[0] = part


def router_pallas(hidden_states, weight, cfg: RouterConfig,
                  training: bool = True, tm: int = 8192,
                  cast_inputs_bf16: bool = True):
    """Pallas implementation of Router.forward.

    Returns (topk_idx, topk_weight, aux_loss), matching the PyTorch module.
    """
    bsz, seq_len, h = hidden_states.shape
    n_exp = cfg.n_routed_experts
    top_k = cfg.num_experts_per_tok
    assert cfg.scoring_func == "softmax"

    # HBM traffic is dominated by reading x: bf16 halves it on every chip.
    if cast_inputs_bf16 and hidden_states.dtype == jnp.float32:
        compute_dtype = jnp.bfloat16
    else:
        compute_dtype = hidden_states.dtype
    x = hidden_states.reshape(-1, h).astype(compute_dtype)       # (N, h)
    weight = weight.astype(compute_dtype)
    n_tok = x.shape[0]

    # Token tile: multiple of 128, big enough to amortize per-step overhead,
    # small enough that the parallel grid axis has >=2 blocks when possible
    # (v7x has 2 TensorCores).  Default 8192 also respects v5e's 16 MiB VMEM.
    half = _round_up(max(1, (n_tok + 1) // 2), 128)
    tm = max(128, min(_round_up(int(tm), 128), half))
    n_pad = _round_up(n_tok, tm)
    if n_pad != n_tok:
        x = jnp.pad(x, ((0, n_pad - n_tok), (0, 0)))
    n_blk = n_pad // tm

    kernel = functools.partial(
        _router_kernel, top_k=top_k, norm_topk_prob=cfg.norm_topk_prob,
        seq_len=seq_len)

    itemsize = jnp.dtype(compute_dtype).itemsize
    cost = pl.CostEstimate(
        flops=2 * n_pad * h * n_exp + 2 * n_pad * n_exp * bsz,
        transcendentals=n_pad * (n_exp + 2),
        bytes_accessed=(n_pad * h * itemsize + n_exp * h * itemsize
                        + n_pad * top_k * 8 + n_blk * n_exp * bsz * 4))

    topk_w_t, topk_i_t, score_sums = pl.pallas_call(
        kernel,
        out_shape=(
            jax.ShapeDtypeStruct((top_k, n_pad), jnp.float32),   # lane-dense
            jax.ShapeDtypeStruct((top_k, n_pad), jnp.int32),     # lane-dense
            jax.ShapeDtypeStruct((n_blk, n_exp, bsz), jnp.float32),
        ),
        grid_spec=pltpu.PrefetchScalarGridSpec(
            num_scalar_prefetch=0,
            grid=(n_blk,),
            in_specs=[
                pl.BlockSpec((tm, h), lambda i: (i, 0)),        # tokens tile
                pl.BlockSpec((n_exp, h), lambda i: (0, 0)),     # full gate weight
            ],
            out_specs=[
                pl.BlockSpec((top_k, tm), lambda i: (0, i)),
                pl.BlockSpec((top_k, tm), lambda i: (0, i)),
                pl.BlockSpec((1, n_exp, bsz), lambda i: (i, 0, 0)),
            ],
        ),
        compiler_params=pltpu.CompilerParams(
            dimension_semantics=("parallel",)),
        cost_estimate=cost,
    )(x, weight)

    # back to token-major (N, k); drop padded rows.  Downstream MoE dispatch
    # could consume the (top_k, N) layout directly and skip this transpose.
    topk_weight = topk_w_t.T[:n_tok]
    topk_idx = topk_i_t.T[:n_tok]

    # ---- auxiliary load-balancing loss (plain-JAX glue over kernel outputs) ----
    if training and cfg.aux_loss_alpha > 0.0:
        alpha = cfg.aux_loss_alpha
        score_sum_be = score_sums.sum(axis=0)                  # (E, bsz)
        topk_idx_for_aux = topk_idx.reshape(bsz, -1)           # (bsz, seq*k)
        if cfg.seq_aux:
            one_hot = jax.nn.one_hot(topk_idx_for_aux, n_exp, dtype=jnp.float32)
            ce = one_hot.sum(axis=1) / (seq_len * top_k / n_exp)      # (bsz, E)
            mean_scores = score_sum_be.T / seq_len                    # (bsz, E)
            aux_loss = (ce * mean_scores).sum(axis=1).mean() * alpha
        else:
            mask_ce = jax.nn.one_hot(topk_idx_for_aux.reshape(-1), n_exp,
                                     dtype=jnp.float32)
            ce = mask_ce.mean(axis=0)
            pi = score_sum_be.sum(axis=1) / n_tok
            fi = ce * n_exp
            aux_loss = (pi * fi).sum() * alpha
    else:
        aux_loss = jnp.float32(0.0)

    return topk_idx, topk_weight, aux_loss


# ----------------------------- parameter init -------------------------------
def init_router_weight(key, cfg: RouterConfig):
    # kaiming_uniform_(a=sqrt(5)) on an (E, h) matrix -> bound = 1/sqrt(fan_in)
    fan_in = cfg.embedding_dim
    bound = 1.0 / math.sqrt(fan_in)
    return jax.random.uniform(
        key, (cfg.n_routed_experts, cfg.embedding_dim),
        minval=-bound, maxval=bound, dtype=jnp.float32)


# ----------------------------- main ------------------------------------------
if __name__ == "__main__":
    cfg = RouterConfig()
    bsz, seq_len, h = 2, 8, cfg.embedding_dim
    top_k = cfg.num_experts_per_tok

    key = jax.random.PRNGKey(0)
    k_w, k_x = jax.random.split(key)
    weight = init_router_weight(k_w, cfg)
    hidden_states = jax.random.normal(k_x, (bsz, seq_len, h), dtype=jnp.float32)

    topk_idx, topk_weight, aux_loss = router_pallas(
        hidden_states, weight, cfg, training=True)
    jax.block_until_ready((topk_idx, topk_weight, aux_loss))

    # shape / range sanity checks
    assert topk_idx.shape == (bsz * seq_len, top_k)
    assert topk_weight.shape == (bsz * seq_len, top_k)
    assert bool(jnp.all(topk_idx >= 0)) and bool(
        jnp.all(topk_idx < cfg.n_routed_experts))

    # pure-JAX reference using the same bf16-cast inputs the kernel consumes
    x2 = hidden_states.reshape(-1, h).astype(jnp.bfloat16).astype(jnp.float32)
    w2 = weight.astype(jnp.bfloat16).astype(jnp.float32)
    ref_scores = jax.nn.softmax(x2 @ w2.T, axis=-1)
    # chosen experts really are the top-k (compare value sums; tie/order robust)
    ref_topk_vals = jax.lax.top_k(ref_scores, top_k)[0]
    got_vals = jnp.take_along_axis(ref_scores, topk_idx, axis=-1)
    assert bool(jnp.allclose(got_vals.sum(-1), ref_topk_vals.sum(-1), atol=2e-5))
    # normalized weights match (approx EUP reciprocal -> slightly looser tol)
    ref_w = got_vals
    if cfg.norm_topk_prob and top_k > 1:
        ref_w = ref_w / (ref_w.sum(-1, keepdims=True) + 1e-20)
    assert bool(jnp.allclose(topk_weight, ref_w, atol=2e-3))
    # aux loss matches the reference formula (seq_aux path)
    one_hot = jax.nn.one_hot(topk_idx.reshape(bsz, -1), cfg.n_routed_experts,
                             dtype=jnp.float32)
    ce = one_hot.sum(axis=1) / (seq_len * top_k / cfg.n_routed_experts)
    ref_aux = (ce * ref_scores.reshape(bsz, seq_len, -1).mean(axis=1)
               ).sum(axis=1).mean() * cfg.aux_loss_alpha
    assert bool(jnp.allclose(aux_loss, ref_aux, atol=1e-4, rtol=2e-3))

    print("KERNEL_OK")
</pallas_src>

<mosaic_0001>
module attributes {stable_mosaic.version = 11 : i64} {
  func.func @_router_kernel(%arg0: i32, %arg1: memref<128x32xbf16, #tpu.memory_space<vmem>>, %arg2: memref<8x32xbf16, #tpu.memory_space<vmem>>, %arg3: memref<2x128xf32, #tpu.memory_space<vmem>>, %arg4: memref<2x128xi32, #tpu.memory_space<vmem>>, %arg5: memref<1x8x2xf32, #tpu.memory_space<vmem>>) attributes {dimension_semantics = [#tpu.dimension_semantics<parallel>], iteration_bounds = array<i64: 1>, scalar_prefetch = 0 : i64, scratch_operands = 0 : i64, tpu.core_type = #tpu.core_type<tc>, window_params = [{transform_indices = @transform_0, window_bounds = array<i64: 128, 32>}, {pipeline_mode = #tpu.pipeline_mode<synchronous>, transform_indices = @transform_1, window_bounds = array<i64: 8, 32>}, {transform_indices = @transform_2, window_bounds = array<i64: 2, 128>}, {transform_indices = @transform_3, window_bounds = array<i64: 2, 128>}, {transform_indices = @transform_4, window_bounds = array<i64: 1, 8, 2>}]} {
    %c0 = arith.constant 0 : index
    %c0_0 = arith.constant 0 : index
    %0 = vector.load %arg1[%c0, %c0_0] : memref<128x32xbf16, #tpu.memory_space<vmem>>, vector<128x32xbf16>
    %c0_1 = arith.constant 0 : index
    %c0_2 = arith.constant 0 : index
    %1 = vector.load %arg2[%c0_1, %c0_2] : memref<8x32xbf16, #tpu.memory_space<vmem>>, vector<8x32xbf16>
    %cst = arith.constant dense<0.000000e+00> : vector<8x128xf32>
    %2 = tpu.matmul %1, %0, %cst {dimension_numbers = #tpu.dot_dimension_numbers<[1], [1], [0], [0], [0, 0, 1, 0], [], []>} : vector<8x32xbf16>, vector<128x32xbf16>, vector<8x128xf32> -> vector<8x128xf32>
    %cst_3 = arith.constant dense<0xFF800000> : vector<128xf32>
    %3 = vector.multi_reduction <maximumf>, %2, %cst_3 [0] : vector<8x128xf32> to vector<128xf32>
    %4 = vector.shape_cast %3 : vector<128xf32> to vector<1x128xf32>
    %5 = vector.broadcast %4 : vector<1x128xf32> to vector<8x128xf32>
    %6 = arith.subf %2, %5 : vector<8x128xf32>
    %7 = math.exp %6 : vector<8x128xf32>
    %cst_4 = arith.constant dense<0.000000e+00> : vector<128xf32>
    %8 = vector.multi_reduction <add>, %7, %cst_4 [0] : vector<8x128xf32> to vector<128xf32>
    %9 = vector.shape_cast %8 : vector<128xf32> to vector<1x128xf32>
    %10 = tpu.reciprocal %9 {approx = true} : vector<1x128xf32> -> vector<1x128xf32>
    %11 = tpu.iota {dimensions = array<i32: 0>} : vector<8x128xi32>
    %12 = arith.sitofp %11 : vector<8x128xi32> to vector<8x128xf32>
    %13 = vector.broadcast %4 : vector<1x128xf32> to vector<8x128xf32>
    %14 = arith.cmpf oeq, %2, %13 : vector<8x128xf32>
    %cst_5 = arith.constant 8.000000e+00 : f32
    %15 = vector.broadcast %cst_5 : f32 to vector<8x128xf32>
    %16 = arith.select %14, %12, %15 : vector<8x128xi1>, vector<8x128xf32>
    %cst_6 = arith.constant dense<0x7F800000> : vector<128xf32>
    %17 = vector.multi_reduction <minimumf>, %16, %cst_6 [0] : vector<8x128xf32> to vector<128xf32>
    %18 = vector.shape_cast %17 : vector<128xf32> to vector<1x128xf32>
    %cst_7 = arith.constant 1.000000e+00 : f32
    %19 = vector.broadcast %cst_7 : f32 to vector<1x128xf32>
    %20 = vector.broadcast %18 : vector<1x128xf32> to vector<8x128xf32>
    %21 = arith.cmpf oeq, %12, %20 : vector<8x128xf32>
    %cst_8 = arith.constant -1.000000e+00 : f32
    %22 = vector.broadcast %cst_8 : f32 to vector<8x128xf32>
    %23 = arith.select %21, %22, %7 : vector<8x128xi1>, vector<8x128xf32>
    %cst_9 = arith.constant dense<0xFF800000> : vector<128xf32>
    %24 = vector.multi_reduction <maximumf>, %23, %cst_9 [0] : vector<8x128xf32> to vector<128xf32>
    %25 = vector.shape_cast %24 : vector<128xf32> to vector<1x128xf32>
    %26 = vector.broadcast %25 : vector<1x128xf32> to vector<8x128xf32>
    %27 = arith.cmpf oeq, %23, %26 : vector<8x128xf32>
    %cst_10 = arith.constant 8.000000e+00 : f32
    %28 = vector.broadcast %cst_10 : f32 to vector<8x128xf32>
    %29 = arith.select %27, %12, %28 : vector<8x128xi1>, vector<8x128xf32>
    %cst_11 = arith.constant dense<0x7F800000> : vector<128xf32>
    %30 = vector.multi_reduction <minimumf>, %29, %cst_11 [0] : vector<8x128xf32> to vector<128xf32>
    %31 = vector.shape_cast %30 : vector<128xf32> to vector<1x128xf32>
    %32 = arith.addf %19, %25 : vector<1x128xf32>
    %cst_12 = arith.constant 9.99999968E-21 : f32
    %33 = vector.broadcast %cst_12 : f32 to vector<1x128xf32>
    %34 = arith.addf %32, %33 : vector<1x128xf32>
    %35 = tpu.reciprocal %34 {approx = true} : vector<1x128xf32> -> vector<1x128xf32>
    %36 = arith.mulf %19, %35 : vector<1x128xf32>
    %37 = arith.mulf %25, %35 : vector<1x128xf32>
    %38 = tpu.concatenate %36, %37 in 0 : vector<1x128xf32>, vector<1x128xf32> -> vector<2x128xf32>
    %c0_13 = arith.constant 0 : index
    %c0_14 = arith.constant 0 : index
    %39 = vector.load %arg3[%c0_13, %c0_14] : memref<2x128xf32, #tpu.memory_space<vmem>>, vector<2x128xf32>
    tpu.vector_store %arg3[%c0_13, %c0_14], %38 {strides = array<i32>} : memref<2x128xf32, #tpu.memory_space<vmem>>, vector<2x128xf32>,
    %40 = tpu.concatenate %18, %31 in 0 : vector<1x128xf32>, vector<1x128xf32> -> vector<2x128xf32>
    %41 = arith.fptosi %40 : vector<2x128xf32> to vector<2x128xi32>
    %c0_15 = arith.constant 0 : index
    %c0_16 = arith.constant 0 : index
    %42 = vector.load %arg4[%c0_15, %c0_16] : memref<2x128xi32, #tpu.memory_space<vmem>>, vector<2x128xi32>
    tpu.vector_store %arg4[%c0_15, %c0_16], %41 {strides = array<i32>} : memref<2x128xi32, #tpu.memory_space<vmem>>, vector<2x128xi32>,
    %c128_i32 = arith.constant 128 : i32
    %43 = arith.muli %arg0, %c128_i32 : i32
    %44 = tpu.iota {dimensions = array<i32: 1>} : vector<2x128xi32>
    %45 = vector.broadcast %43 : i32 to vector<2x128xi32>
    %46 = arith.addi %45, %44 : vector<2x128xi32>
    %47 = tpu.iota {dimensions = array<i32: 0>} : vector<2x128xi32>
    %c8_i32 = arith.constant 8 : i32
    %48 = vector.broadcast %c8_i32 : i32 to vector<2x128xi32>
    %49 = arith.muli %47, %48 : vector<2x128xi32>
    %50 = arith.cmpi sge, %46, %49 : vector<2x128xi32>
    %c1_i32 = arith.constant 1 : i32
    %51 = vector.broadcast %c1_i32 : i32 to vector<2x128xi32>
    %52 = arith.addi %47, %51 : vector<2x128xi32>
    %c8_i32_17 = arith.constant 8 : i32
    %53 = vector.broadcast %c8_i32_17 : i32 to vector<2x128xi32>
    %54 = arith.muli %52, %53 : vector<2x128xi32>
    %55 = arith.cmpi slt, %46, %54 : vector<2x128xi32>
    %56 = arith.andi %50, %55 : vector<2x128xi1>
    %57 = arith.extui %56 : vector<2x128xi1> to vector<2x128xi32>
    %58 = arith.sitofp %57 : vector<2x128xi32> to vector<2x128xf32>
    %59 = vector.broadcast %10 : vector<1x128xf32> to vector<2x128xf32>
    %60 = arith.mulf %58, %59 : vector<2x128xf32>
    %cst_18 = arith.constant dense<0.000000e+00> : vector<8x2xf32>
    %61 = tpu.matmul %7, %60, %cst_18 {dimension_numbers = #tpu.dot_dimension_numbers<[1], [1], [0], [0], [0, 0, 1, 0], [], []>} : vector<8x128xf32>, vector<2x128xf32>, vector<8x2xf32> -> vector<8x2xf32>
    %c0_19 = arith.constant 0 : index
    %c0_20 = arith.constant 0 : index
    %c0_21 = arith.constant 0 : index
    %62 = vector.load %arg5[%c0_19, %c0_20, %c0_21] : memref<1x8x2xf32, #tpu.memory_space<vmem>>, vector<1x8x2xf32>
    %63 = vector.shape_cast %62 : vector<1x8x2xf32> to vector<8x2xf32>
    %64 = vector.shape_cast %61 : vector<8x2xf32> to vector<1x8x2xf32>
    tpu.vector_store %arg5[%c0_19, %c0_20, %c0_21], %64 {strides = array<i32>} : memref<1x8x2xf32, #tpu.memory_space<vmem>>, vector<1x8x2xf32>,
    return
  }
  func.func @transform_0(%arg0: i32) -> (i32, i32) {
    %c0_i32 = arith.constant 0 : i32
    %c0_i32_0 = arith.constant 0 : i32
    return %arg0, %c0_i32 : i32, i32
  }
  func.func @transform_1(%arg0: i32) -> (i32, i32) {
    %c0_i32 = arith.constant 0 : i32
    %c0_i32_0 = arith.constant 0 : i32
    %c0_i32_1 = arith.constant 0 : i32
    return %c0_i32, %c0_i32_0 : i32, i32
  }
  func.func @transform_2(%arg0: i32) -> (i32, i32) {
    %c0_i32 = arith.constant 0 : i32
    %c0_i32_0 = arith.constant 0 : i32
    return %c0_i32, %arg0 : i32, i32
  }
  func.func @transform_3(%arg0: i32) -> (i32, i32) {
    %c0_i32 = arith.constant 0 : i32
    %c0_i32_0 = arith.constant 0 : i32
    return %c0_i32, %arg0 : i32, i32
  }
  func.func @transform_4(%arg0: i32) -> (i32, i32, i32) {
    %c0_i32 = arith.constant 0 : i32
    %c0_i32_0 = arith.constant 0 : i32
    %c0_i32_1 = arith.constant 0 : i32
    return %arg0, %c0_i32, %c0_i32_0 : i32, i32, i32
  }
}

</mosaic_0001>

<llo_original>
// kernel: tpu_custom_call.1
$region0: #{tpu_custom_call.1}
  #allocation0 [shape = 'u32[]', space=smem, size = 0x4, offset = 0x4, fixed_abs, tag = 'smem constant byte address 0x4 - core index']
  #allocation1 [shape = 'u32[144,128]{1,0:T(1,128)}', space=vmem, size = 0x12000, scoped, tag = 'internal scratch']
  %s0 = inlined_call_operand.vmem [shape: bf16[128,32], index: 0, kind: input, shape index: {}]
  %s1 = inlined_call_operand.vmem [shape: bf16[8,32], index: 1, kind: input, shape index: {}]
  %s2 = inlined_call_operand.hbm [shape: f32[2,128], index: 2, kind: output, shape index: {0}]
  %s3 = inlined_call_operand.hbm [shape: s32[2,128], index: 3, kind: output, shape index: {1}]
  %s4 = inlined_call_operand.vmem [shape: f32[1,8,2], index: 4, kind: output, shape index: {2}]
  %5 = xla_tuple %s2, %s3, %s4
  %s6 = sld [smem:[#allocation0]]
  $region34: #{tpu_custom_call.1} parent=0
    _
  %s8 = ssub.s32 1, %s6
  %s9 = scalar_select 0, %s8, %s6
  $region1: #{tpu_custom_call.1} parent=0
    #allocation2 [shape = 'u8[1024]{0}', space=vmem, size = 0x400, scoped, tag = 'output window, operand 0, single buffered']
    #allocation3 [shape = 's32[1]{0}', space=sflag, size = 0x4, scoped, tag = 'scoped memory for tpu_custom_call.1']
    #allocation4 [shape = 'u8[1024]{0}', space=vmem, size = 0x400, scoped, tag = 'output window, operand 1, single buffered']
    #allocation5 [shape = 's32[1]{0}', space=sflag, size = 0x4, scoped, tag = 'scoped memory for tpu_custom_call.1']
    %10 = vsyncpa [#allocation3], 0
    %11 = vsyncpa [#allocation5], 0
    // Predicated region
    $region2: #{tpu_custom_call.1} parent=1 // pred_check
      _
    $region3: #{tpu_custom_call.1} parent=1 // pred_check_branch
      %13 = sbr.rel (0) target = $region5
    $region4: #{tpu_custom_call.1} parent=1 // pred_region
      _
    $region5: #{tpu_custom_call.1} parent=1 // pred_fallthru
      _
    // Predicated region
    $region6: #{tpu_custom_call.1} parent=1 // pred_check
      _
    $region7: #{tpu_custom_call.1} parent=1 // pred_check_branch
      %15 = sbr.rel (0) target = $region9
    $region8: #{tpu_custom_call.1} parent=1 // pred_region
      _
    $region9: #{tpu_custom_call.1} parent=1 // pred_fallthru
      _
    %v17 = vld [vmem:[%s0] sm:$0xf]
    %v18 = vld [vmem:[%s0 + $0x4] sm:$0xf]
    %v19 = vld [vmem:[%s0 + $0x8] sm:$0xf]
    %v20 = vld [vmem:[%s0 + $0xc] sm:$0xf]
    %v21 = vld [vmem:[%s0 + $0x10] sm:$0xf]
    %v22 = vld [vmem:[%s0 + $0x14] sm:$0xf]
    %v23 = vld [vmem:[%s0 + $0x18] sm:$0xf]
    %v24 = vld [vmem:[%s0 + $0x1c] sm:$0xf]
    %v25 = vld [vmem:[%s0 + $0x20] sm:$0xf]
    %v26 = vld [vmem:[%s0 + $0x24] sm:$0xf]
    %v27 = vld [vmem:[%s0 + $0x28] sm:$0xf]
    %v28 = vld [vmem:[%s0 + $0x2c] sm:$0xf]
    %v29 = vld [vmem:[%s0 + $0x30] sm:$0xf]
    %v30 = vld [vmem:[%s0 + $0x34] sm:$0xf]
    %v31 = vld [vmem:[%s0 + $0x38] sm:$0xf]
    %v32 = vld [vmem:[%s0 + $0x3c] sm:$0xf]
    %v33 = vld [vmem:[%s1] sm:$0xf]
    %v50 = vunpack.c.l.b16 %v17
    %v51 = vunpack.c.l.b16 %v18
    %v52 = vunpack.c.l.b16 %v19
    %v53 = vunpack.c.l.b16 %v20
    %v54 = vunpack.c.l.b16 %v21
    %v55 = vunpack.c.l.b16 %v22
    %v56 = vunpack.c.l.b16 %v23
    %v57 = vunpack.c.l.b16 %v24
    %v58 = vunpack.c.l.b16 %v25
    %v59 = vunpack.c.l.b16 %v26
    %v60 = vunpack.c.l.b16 %v27
    %v61 = vunpack.c.l.b16 %v28
    %v62 = vunpack.c.l.b16 %v29
    %v63 = vunpack.c.l.b16 %v30
    %v64 = vunpack.c.l.b16 %v31
    %v65 = vunpack.c.l.b16 %v32
    %v66 = vpack.c.b16 %v51, %v50
    %v67 = vpack.c.b16 %v53, %v52
    %v68 = vpack.c.b16 %v55, %v54
    %v69 = vpack.c.b16 %v57, %v56
    %v70 = vpack.c.b16 %v59, %v58
    %v71 = vpack.c.b16 %v61, %v60
    %v72 = vpack.c.b16 %v63, %v62
    %v73 = vpack.c.b16 %v65, %v64
    %vm74 = vcmask 261120
    %v76 = vsel %vm74, %v33, 0
    %v79 = vsel %vm74, %v66, 0
    %v82 = vsel %vm74, %v67, 0
    %v85 = vsel %vm74, %v68, 0
    %v88 = vsel %vm74, %v69, 0
    %v91 = vsel %vm74, %v70, 0
    %v94 = vsel %vm74, %v71, 0
    %v97 = vsel %vm74, %v72, 0
    %v100 = vsel %vm74, %v73, 0
    %102 = vmatprep.subr.bf16.mxu0 0
    %103 = vmatpush1.bf16.xpose.msra.mxu0 %v100
    %104 = vmatprep.subr.bf16.mxu0 0
    %105 = vmatpush1.bf16.xpose.msra.mxu0 %v97
    %106 = vmatprep.subr.bf16.mxu0 0
    %107 = vmatpush1.bf16.xpose.msra.mxu0 %v94
    %108 = vmatprep.subr.bf16.mxu0 0
    %109 = vmatpush1.bf16.xpose.msra.mxu0 %v91
    %110 = vmatprep.subr.bf16.mxu0 0
    %111 = vmatpush1.bf16.xpose.msra.mxu0 %v88
    %112 = vmatprep.subr.bf16.mxu0 0
    %113 = vmatpush1.bf16.xpose.msra.mxu0 %v85
    %114 = vmatprep.subr.bf16.mxu0 0
    %115 = vmatpush1.bf16.xpose.msra.mxu0 %v82
    %116 = vmatprep.subr.bf16.mxu0 0
    %117 = vmatpush1.bf16.xpose.msra.mxu0 %v79
    %118 = vmatprep.subr.bf16.mxu0 0
    %119 = vmatpush2.bf16.xpose.msra.mxu0 0
    %120 = vmatprep.subr.bf16.mxu0 0
    %121 = vmatpush2.bf16.xpose.msra.mxu0 0
    %122 = vmatprep.subr.bf16.mxu0 0
    %123 = vmatpush2.bf16.xpose.msra.mxu0 0
    %124 = vmatprep.subr.bf16.mxu0 0
    %125 = vmatpush2.bf16.xpose.msra.mxu0 0
    %126 = vmatprep.subr.bf16.mxu0 0
    %127 = vmatpush2.bf16.xpose.msra.mxu0 0
    %128 = vmatprep.subr.bf16.mxu0 0
    %129 = vmatpush2.bf16.xpose.msra.mxu0 0
    %130 = vmatprep.subr.bf16.mxu0 0
    %131 = vmatpush2.bf16.xpose.msra.mxu0 0
    %132 = vmatprep.subr.bf16.mxu0 0
    %133 = vmatpush2.bf16.xpose.msra.mxu0 0
    %134 = vmatprep.mubr.bf16.mxu0 0
    %135 = vmatmul.mubr.bf16.gmra.mxu0 %v76
    %v136 = vpop.f32.mrf.mxu0
    %v137 = vadd.f32 0.0, %v136
    %v138 = vpop.f32.mrf.mxu0
    %v139 = vpop.f32.mrf.mxu0
    %v140 = vpop.f32.mrf.mxu0
    %141 = vdwg.mxu0
    %v142 = vrot.slane %v137, 4
    %v143 = vmax.f32 %v137, %v142
    %v144 = vrot.slane %v143, 2
    %v145 = vmax.f32 %v143, %v144
    %v146 = vrot.slane %v145, 1
    %v147 = vmax.f32 %v145, %v146
    %v148 = vsub.f32 %v137, %v147
    %v149 = vmul.f32 %v148, 1.442695
    %v150 = vpow.pop %v149
    %v151 = vrot.slane %v150, 4
    %v152 = vadd.f32 %v150, %v151
    %v153 = vrot.slane %v152, 2
    %v154 = vadd.f32 %v152, %v153
    %v155 = vrot.slane %v154, 1
    %v156 = vadd.f32 %v154, %v155
    %v157 = vrcp.pop %v156
    %v158 = vlaneseq
    %v159 = vshrl.u32 %v158, 7
    %v160 = vcvt.s32.f32 %v159
    %vm161 = vcmp.eq.f32.partialorder %v137, %v147
    %v162 = vsel %vm161, %v160, 8.0
    %v163 = vrot.slane %v162, 4
    %v164 = vmin.f32 %v162, %v163
    %v165 = vrot.slane %v164, 2
    %v166 = vmin.f32 %v164, %v165
    %v167 = vrot.slane %v166, 1
    %v168 = vmin.f32 %v166, %v167
    %vm169 = vcmp.eq.f32.partialorder %v160, %v168
    %v170 = vsel %vm169, -1.0, %v150
    %v171 = vrot.slane %v170, 4
    %v172 = vmax.f32 %v170, %v171
    %v173 = vrot.slane %v172, 2
    %v174 = vmax.f32 %v172, %v173
    %v175 = vrot.slane %v174, 1
    %v176 = vmax.f32 %v174, %v175
    %vm177 = vcmp.eq.f32.partialorder %v170, %v176
    %v178 = vsel %vm177, %v160, 8.0
    %v179 = vrot.slane %v178, 4
    %v180 = vmin.f32 %v178, %v179
    %v181 = vrot.slane %v180, 2
    %v182 = vmin.f32 %v180, %v181
    %v183 = vrot.slane %v182, 1
    %v184 = vmin.f32 %v182, %v183
    %v185 = vadd.f32 %v176, 1.0
    %v186 = vadd.f32 %v185, 1e-20
    %v187 = vrcp.pop %v186
    %v188 = vmul.f32 %v176, %v187
    %vm189 = vcmask 1040384
    %v190 = vsel %vm189, %v187, %v188
    %191 = vst [vmem:[#allocation2] sm:$0x3] %v190
    %v192 = vsel %vm189, %v168, %v184
    %v193 = vcvt.f32.s32.to.zero.pseudo %v192
    %194 = vst [vmem:[#allocation4] sm:$0x3] %v193
    %s195 = smul.u32 0, 128
    %v196 = vlaneseq
    %v197 = vand.u32 %v196, 127
    %v198 = vstv %s195
    %v199 = vadd.s32 %v198, %v197
    %v200 = vmul.u32 %v159, 8
    %vm201 = vcmp.ge.s32.totalorder %v199, %v200
    %v202 = vadd.s32 %v159, 1
    %v203 = vmul.u32 %v202, 8
    %vm204 = vcmp.lt.s32.totalorder %v199, %v203
    %vm205 = vmand %vm201, %vm204
    %v206 = vsel %vm205, 1, 0
    %v207 = vcvt.s32.f32 %v206
    %v208 = vmul.f32 %v207, %v157
    %209 = vmatprep.subr.mxu0 0.0
    %210 = vmatpush1.xpose.msra.mxu0 0.0
    %211 = vmatprep.subr.mxu0 0.0
    %212 = vmatpush1.xpose.msra.mxu0 0.0
    %213 = vmatprep.subr.mxu0 0.0
    %214 = vmatpush1.xpose.msra.mxu0 0.0
    %215 = vmatprep.subr.mxu0 0.0
    %216 = vmatpush1.xpose.msra.mxu0 0.0
    %217 = vmatprep.subr.mxu0 0.0
    %218 = vmatpush1.xpose.msra.mxu0 0.0
    %219 = vmatprep.subr.mxu0 0.0
    %220 = vmatpush1.xpose.msra.mxu0 0.0
    %221 = vmatprep.subr.mxu0 0.0
    %222 = vmatpush1.xpose.msra.mxu0 0.0
    %223 = vmatprep.subr.mxu0 0.0
    %224 = vmatpush1.xpose.msra.mxu0 0.0
    %225 = vmatprep.subr.mxu0 0.0
    %226 = vmatpush1.xpose.msra.mxu0 0.0
    %227 = vmatprep.subr.mxu0 0.0
    %228 = vmatpush1.xpose.msra.mxu0 0.0
    %229 = vmatprep.subr.mxu0 0.0
    %230 = vmatpush1.xpose.msra.mxu0 0.0
    %231 = vmatprep.subr.mxu0 0.0
    %232 = vmatpush1.xpose.msra.mxu0 0.0
    %233 = vmatprep.subr.mxu0 0.0
    %234 = vmatpush1.xpose.msra.mxu0 0.0
    %235 = vmatprep.subr.mxu0 0.0
    %236 = vmatpush1.xpose.msra.mxu0 0.0
    %237 = vmatprep.subr.mxu0 0.0
    %238 = vmatpush1.xpose.msra.mxu0 0.0
    %239 = vmatprep.subr.mxu0 0.0
    %240 = vmatpush1.xpose.msra.mxu0 %v208
    %241 = vmatprep.subr.mxu0 0.0
    %242 = vmatpush2.xpose.msra.mxu0 0.0
    %243 = vmatprep.subr.mxu0 0.0
    %244 = vmatpush2.xpose.msra.mxu0 0.0
    %245 = vmatprep.subr.mxu0 0.0
    %246 = vmatpush2.xpose.msra.mxu0 0.0
    %247 = vmatprep.subr.mxu0 0.0
    %248 = vmatpush2.xpose.msra.mxu0 0.0
    %249 = vmatprep.subr.mxu0 0.0
    %250 = vmatpush2.xpose.msra.mxu0 0.0
    %251 = vmatprep.subr.mxu0 0.0
    %252 = vmatpush2.xpose.msra.mxu0 0.0
    %253 = vmatprep.subr.mxu0 0.0
    %254 = vmatpush2.xpose.msra.mxu0 0.0
    %255 = vmatprep.subr.mxu0 0.0
    %256 = vmatpush2.xpose.msra.mxu0 0.0
    %257 = vmatprep.subr.mxu0 0.0
    %258 = vmatpush2.xpose.msra.mxu0 0.0
    %259 = vmatprep.subr.mxu0 0.0
    %260 = vmatpush2.xpose.msra.mxu0 0.0
    %261 = vmatprep.subr.mxu0 0.0
    %262 = vmatpush2.xpose.msra.mxu0 0.0
    %263 = vmatprep.subr.mxu0 0.0
    %264 = vmatpush2.xpose.msra.mxu0 0.0
    %265 = vmatprep.subr.mxu0 0.0
    %266 = vmatpush2.xpose.msra.mxu0 0.0
    %267 = vmatprep.subr.mxu0 0.0
    %268 = vmatpush2.xpose.msra.mxu0 0.0
    %269 = vmatprep.subr.mxu0 0.0
    %270 = vmatpush2.xpose.msra.mxu0 0.0
    %271 = vmatprep.subr.mxu0 0.0
    %272 = vmatpush2.xpose.msra.mxu0 0.0
    %273 = vmatprep.mubr.f32.mxu0 0.0
    %274 = vmatmul.mubr.f32.gmra.mxu0 %v150
    %v275 = vpop.f32.mrf.mxu0
    %v276 = vadd.f32 0.0, %v275
    %v277 = vpop.f32.mrf.mxu0
    %278 = vdwg.mxu0
    %vm279 = vcmask 15360
    %280 = vst.msk [vmem:[%s4] sm:$0xff] %vm279, %v276
    // Predicated region
    $region10: #{tpu_custom_call.1} parent=1 // pred_check
      _
    $region11: #{tpu_custom_call.1} parent=1 // pred_check_branch
      %282 = sbr.rel (0) target = $region13
    $region12: #{tpu_custom_call.1} parent=1 // pred_region
      %s284 = ssub.s32 32, 32
      %285 = vsyncadd [#allocation3], %s284
      %s287 = sshll.u32 [#allocation2], 4
      %s288 = int_to_ptr.vmem [resolvable:$true] %s287
      %290 = dma.vmem_to_hbm [thread:$0]  %s288, 32, %s2, [#allocation3]
    $region13: #{tpu_custom_call.1} parent=1 // pred_fallthru
      _
    // Predicated region
    $region14: #{tpu_custom_call.1} parent=1 // pred_check
      _
    $region15: #{tpu_custom_call.1} parent=1 // pred_check_branch
      %292 = sbr.rel (0) target = $region17
    $region16: #{tpu_custom_call.1} parent=1 // pred_region
      %s294 = ssub.s32 32, 32
      %295 = vsyncadd [#allocation5], %s294
      %s297 = sshll.u32 [#allocation4], 4
      %s298 = int_to_ptr.vmem [resolvable:$true] %s297
      %300 = dma.vmem_to_hbm [thread:$0]  %s298, 32, %s3, [#allocation5]
    $region17: #{tpu_custom_call.1} parent=1 // pred_fallthru
      _
    // Predicated region
    $region18: #{tpu_custom_call.1} parent=1 // pred_check
      _
    $region19: #{tpu_custom_call.1} parent=1 // pred_check_branch
      %302 = sbr.rel (0) target = $region21
    $region20: #{tpu_custom_call.1} parent=1 // pred_region
      _
    $region21: #{tpu_custom_call.1} parent=1 // pred_fallthru
      _
    // Predicated region
    $region22: #{tpu_custom_call.1} parent=1 // pred_check
      _
    $region23: #{tpu_custom_call.1} parent=1 // pred_check_branch
      %304 = sbr.rel (0) target = $region25
    $region24: #{tpu_custom_call.1} parent=1 // pred_region
      %305 = dma.done [#allocation3], 32
    $region25: #{tpu_custom_call.1} parent=1 // pred_fallthru
      _
    // Predicated region
    $region26: #{tpu_custom_call.1} parent=1 // pred_check
      _
    $region27: #{tpu_custom_call.1} parent=1 // pred_check_branch
      %307 = sbr.rel (0) target = $region29
    $region28: #{tpu_custom_call.1} parent=1 // pred_region
      %308 = dma.done [#allocation5], 32
    $region29: #{tpu_custom_call.1} parent=1 // pred_fallthru
      _
    // Predicated region
    $region30: #{tpu_custom_call.1} parent=1 // pred_check
      _
    $region31: #{tpu_custom_call.1} parent=1 // pred_check_branch
      %310 = sbr.rel (0) target = $region33
    $region32: #{tpu_custom_call.1} parent=1 // pred_region
      _
    $region33: #{tpu_custom_call.1} parent=1 // pred_fallthru
      _
    %311 = vsyncpa [#allocation3], 1
    %312 = vsyncpa [#allocation5], 1

</llo_original>
